<compile_context>
chip_gen: v5e
topology: v5e:2x2
jax: 0.10.0
libtpu: 0.0.40
codegen_flags: <defaults>
</compile_context>

<pallas_src>
import functools

import jax
import jax.numpy as jnp
from jax.experimental import pallas as pl
from jax.experimental.pallas import tpu as pltpu


def get_quantized_range(num_bits, signed=True):
    if signed:
        n = 2 ** (num_bits - 1)
        return -n, n - 1
    return 0, 2 ** num_bits - 1


def _round_up(x, m):
    return (x + m - 1) // m * m


# --------------------------------------------------------------------------------------
# Kernel 1: quantize input tile + integer-valued matmul (bf16 on MXU) + bias + accum clamp
# --------------------------------------------------------------------------------------
def _quant_matmul_kernel(x_ref, wq_ref, bq_ref, scale_ref, acc_out_ref, acc_ref,
                         *, acts_min, acts_max, accum_min, accum_max):
    k = pl.program_id(2)

    @pl.when(k == 0)
    def _():
        acc_ref[...] = jnp.zeros_like(acc_ref)

    in_scale = scale_ref[0, 0]                                   # SMEM scalar
    x = x_ref[...].astype(jnp.float32)                           # (tm, tk)
    # linear_quantize_clamp of the input; result is integer-valued -> exact in bf16.
    x_q = jnp.clip(jnp.round(x * in_scale), acts_min, acts_max).astype(jnp.bfloat16)
    acc_ref[...] += jnp.dot(x_q, wq_ref[...],                    # (tm, tk) @ (tk, tn)
                            preferred_element_type=jnp.float32)

    @pl.when(k == pl.num_programs(2) - 1)
    def _():
        accum = acc_ref[...] + bq_ref[...].astype(jnp.float32)   # bias_q broadcast (1, tn)
        acc_out_ref[...] = jnp.clip(accum, accum_min, accum_max)


# --------------------------------------------------------------------------------------
# Kernel 2: requantize (clamp to act range) + dequantize, elementwise over accum tiles
# --------------------------------------------------------------------------------------
def _requant_kernel(acc_ref, scales_ref, out_ref, *, acts_min, acts_max):
    requant_scale = scales_ref[0, 0]
    inv_out_scale = scales_ref[0, 1]
    out_q = jnp.clip(jnp.round(acc_ref[...] * requant_scale), acts_min, acts_max)
    out_ref[...] = (out_q * inv_out_scale).astype(out_ref.dtype)


# --------------------------------------------------------------------------------------
# "__init__"-time parameter quantization (input independent; done once per layer).
# --------------------------------------------------------------------------------------
def quantize_linear_params(weight, num_bits_acts=8, *, tn=None, tk=None):
    OUT, IN = weight.shape
    acts_min, acts_max = get_quantized_range(num_bits_acts, signed=True)
    tn = tn or min(256, _round_up(OUT, 128))
    tk = tk or min(512, _round_up(IN, 128))
    n_pad = _round_up(OUT, tn)
    k_pad = _round_up(IN, tk)
    w_scale = acts_max / jnp.maximum(jnp.max(jnp.abs(weight)), 1e-12)
    w_qt = jnp.clip(jnp.round(weight.astype(jnp.float32).T * w_scale),
                    acts_min, acts_max).astype(jnp.bfloat16)        # (IN, OUT), int-valued
    w_qt = jnp.pad(w_qt, ((0, k_pad - IN), (0, n_pad - OUT)))
    return w_qt, w_scale, tn, tk


# --------------------------------------------------------------------------------------
# Forward pass of RangeLinearQuantWrapper around a Linear layer.
# --------------------------------------------------------------------------------------
def range_linear_quant_linear(x, weight, bias, num_bits_acts=8, num_bits_accum=32,
                              *, tm=None, tn=None, tk=None):
    B, IN = x.shape
    OUT, IN_w = weight.shape
    assert IN == IN_w

    acts_min, acts_max = get_quantized_range(num_bits_acts, signed=True)
    accum_min, accum_max = get_quantized_range(num_bits_accum, signed=True)

    # Init-time weight quantization (input independent; here per call only for the demo).
    w_qt, w_scale, tn, tk = quantize_linear_params(weight, num_bits_acts, tn=tn, tk=tk)
    k_pad, n_pad = w_qt.shape

    m8 = _round_up(B, 8)
    tm = tm or min(256, m8)
    m_pad = _round_up(m8, tm)

    # ---- pre_quantized_forward: dynamic symmetric input scale (global reduction) ----
    in_scale = acts_max / jnp.maximum(jnp.max(jnp.abs(x)), 1e-12)
    bias_scale = in_scale * w_scale
    bias_q = jnp.clip(jnp.round(bias.astype(jnp.float32) * bias_scale),
                      accum_min, accum_max)
    bias_q = jnp.pad(bias_q, (0, n_pad - OUT)).reshape(1, n_pad)

    x_pad = x
    if m_pad != B or k_pad != IN:
        x_pad = jnp.pad(x, ((0, m_pad - B), (0, k_pad - IN)))

    grid = (m_pad // tm, n_pad // tn, k_pad // tk)

    mm_kernel = functools.partial(
        _quant_matmul_kernel,
        acts_min=float(acts_min), acts_max=float(acts_max),
        accum_min=float(accum_min), accum_max=float(accum_max))

    cost = pl.CostEstimate(
        flops=2 * m_pad * n_pad * k_pad,
        transcendentals=0,
        bytes_accessed=int(x_pad.size * x_pad.dtype.itemsize
                           + w_qt.size * 2 + m_pad * n_pad * 4))

    # ---- wrapped_module.forward (quantized Linear) + accumulator clamp ----
    accum = pl.pallas_call(
        mm_kernel,
        out_shape=jax.ShapeDtypeStruct((m_pad, n_pad), jnp.float32),
        grid_spec=pltpu.PrefetchScalarGridSpec(
            num_scalar_prefetch=0,
            grid=grid,
            in_specs=[
                pl.BlockSpec((tm, tk), lambda i, j, k: (i, k)),
                pl.BlockSpec((tk, tn), lambda i, j, k: (k, j)),
                pl.BlockSpec((1, tn), lambda i, j, k: (0, j)),
                pl.BlockSpec((1, 1), lambda i, j, k: (0, 0),
                             memory_space=pltpu.SMEM),
            ],
            out_specs=pl.BlockSpec((tm, tn), lambda i, j, k: (i, j)),
            scratch_shapes=[pltpu.VMEM((tm, tn), jnp.float32)],
        ),
        compiler_params=pltpu.CompilerParams(
            dimension_semantics=("parallel", "parallel", "arbitrary")),
        cost_estimate=cost,
    )(x_pad, w_qt, bias_q, jnp.reshape(in_scale, (1, 1)).astype(jnp.float32))

    # ---- post_quantized_forward: global max over the real (unpadded) accumulator ----
    y_f_max = jnp.maximum(jnp.max(jnp.abs(accum[:B, :OUT])), 1e-12) / bias_scale
    out_scale = acts_max / y_f_max
    requant_scale = out_scale / bias_scale
    scales = jnp.stack([requant_scale, 1.0 / out_scale]).reshape(1, 2).astype(jnp.float32)

    rq_kernel = functools.partial(_requant_kernel,
                                  acts_min=float(acts_min), acts_max=float(acts_max))

    # ---- linear_quantize_clamp (requantize) then linear_dequantize ----
    out_pad = pl.pallas_call(
        rq_kernel,
        out_shape=jax.ShapeDtypeStruct((m_pad, n_pad), jnp.float32),
        grid_spec=pltpu.PrefetchScalarGridSpec(
            num_scalar_prefetch=0,
            grid=(m_pad // tm, n_pad // tn),
            in_specs=[
                pl.BlockSpec((tm, tn), lambda i, j: (i, j)),
                pl.BlockSpec((1, 2), lambda i, j: (0, 0), memory_space=pltpu.SMEM),
            ],
            out_specs=pl.BlockSpec((tm, tn), lambda i, j: (i, j)),
        ),
        compiler_params=pltpu.CompilerParams(
            dimension_semantics=("parallel", "parallel")),
    )(accum, scales)

    return out_pad[:B, :OUT]


# --------------------------------------------------------------------------------------
# Pure-JAX reference mirroring the PyTorch forward.
# --------------------------------------------------------------------------------------
def _reference(x, weight, bias, num_bits_acts=8, num_bits_accum=32):
    acts_min, acts_max = get_quantized_range(num_bits_acts, signed=True)
    accum_min, accum_max = get_quantized_range(num_bits_accum, signed=True)
    w_scale = acts_max / jnp.max(jnp.abs(weight))
    w_q = jnp.clip(jnp.round(weight * w_scale), acts_min, acts_max)
    in_scale = acts_max / jnp.max(jnp.abs(x))
    x_q = jnp.clip(jnp.round(x * in_scale), acts_min, acts_max)
    bias_scale = in_scale * w_scale
    b_q = jnp.clip(jnp.round(bias * bias_scale), accum_min, accum_max)
    accum = x_q @ w_q.T + b_q
    accum = jnp.clip(accum, accum_min, accum_max)
    out_scale = acts_max / (jnp.max(jnp.abs(accum)) / bias_scale)
    requant = out_scale / bias_scale
    out_q = jnp.clip(jnp.round(accum * requant), acts_min, acts_max)
    return out_q / out_scale


if __name__ == "__main__":
    key = jax.random.PRNGKey(0)

    # Test 1: small shapes (single tile after padding to lane-dense (8, 128) blocks).
    k1, k2, k3, k4, k5, k6 = jax.random.split(key, 6)
    B, IN, OUT = 8, 32, 32
    x = jax.random.normal(k1, (B, IN), dtype=jnp.float32)
    weight = jax.random.normal(k2, (OUT, IN), dtype=jnp.float32) * 0.1
    bias = jax.random.normal(k3, (OUT,), dtype=jnp.float32) * 0.1

    out = range_linear_quant_linear(x, weight, bias)
    out = jax.block_until_ready(out)
    ref = _reference(x, weight, bias)
    assert out.shape == (B, OUT)
    assert jnp.allclose(out, ref, rtol=1e-5, atol=1e-5), "mismatch vs reference (test 1)"

    # Test 2: forces a multi-tile grid (2, 2, 2) to exercise k-accumulation + parallel axes.
    B2, IN2, OUT2 = 16, 256, 256
    x2 = jax.random.normal(k4, (B2, IN2), dtype=jnp.float32)
    w2 = jax.random.normal(k5, (OUT2, IN2), dtype=jnp.float32) * 0.1
    b2 = jax.random.normal(k6, (OUT2,), dtype=jnp.float32) * 0.1

    out2 = range_linear_quant_linear(x2, w2, b2, tm=8, tn=128, tk=128)
    out2 = jax.block_until_ready(out2)
    ref2 = _reference(x2, w2, b2)
    assert out2.shape == (B2, OUT2)
    assert jnp.allclose(out2, ref2, rtol=1e-5, atol=1e-5), "mismatch vs reference (test 2)"

    print("KERNEL_OK")
</pallas_src>

<mosaic_0001>
module attributes {stable_mosaic.version = 11 : i64} {
  func.func @_quant_matmul_kernel(%arg0: i32, %arg1: i32, %arg2: i32, %arg3: memref<8x128xf32, #tpu.memory_space<vmem>>, %arg4: memref<128x128xbf16, #tpu.memory_space<vmem>>, %arg5: memref<1x128xf32, #tpu.memory_space<vmem>>, %arg6: memref<1x1xf32, #tpu.memory_space<smem>>, %arg7: memref<8x128xf32, #tpu.memory_space<vmem>>, %arg8: memref<8x128xf32, #tpu.memory_space<vmem>>) attributes {dimension_semantics = [#tpu.dimension_semantics<parallel>, #tpu.dimension_semantics<parallel>, #tpu.dimension_semantics<arbitrary>], iteration_bounds = array<i64: 1, 1, 1>, scalar_prefetch = 0 : i64, scratch_operands = 1 : i64, tpu.core_type = #tpu.core_type<tc>, window_params = [{transform_indices = @transform_0, window_bounds = array<i64: 8, 128>}, {transform_indices = @transform_1, window_bounds = array<i64: 128, 128>}, {transform_indices = @transform_2, window_bounds = array<i64: 1, 128>}, {transform_indices = @transform_3, window_bounds = array<i64: 1, 1>}, {transform_indices = @transform_4, window_bounds = array<i64: 8, 128>}]} {
    %c0_i32 = arith.constant 0 : i32
    %0 = arith.cmpi eq, %arg2, %c0_i32 : i32
    %1 = arith.extui %0 : i1 to i32
    %c0_i32_0 = arith.constant 0 : i32
    %2 = arith.cmpi ne, %1, %c0_i32_0 : i32
    scf.if %2 {
      %cst_14 = arith.constant 0.000000e+00 : f32
      %21 = vector.broadcast %cst_14 : f32 to vector<8x128xf32>
      %c0_15 = arith.constant 0 : index
      %c0_16 = arith.constant 0 : index
      %22 = vector.load %arg8[%c0_15, %c0_16] : memref<8x128xf32, #tpu.memory_space<vmem>>, vector<8x128xf32>
      tpu.vector_store %arg8[%c0_15, %c0_16], %21 {strides = array<i32>} : memref<8x128xf32, #tpu.memory_space<vmem>>, vector<8x128xf32>,
    } else {
    }
    %c0 = arith.constant 0 : index
    %c0_1 = arith.constant 0 : index
    %3 = memref.load %arg6[%c0, %c0_1] : memref<1x1xf32, #tpu.memory_space<smem>>
    %c0_2 = arith.constant 0 : index
    %c0_3 = arith.constant 0 : index
    %4 = vector.load %arg3[%c0_2, %c0_3] : memref<8x128xf32, #tpu.memory_space<vmem>>, vector<8x128xf32>
    %5 = vector.broadcast %3 : f32 to vector<8x128xf32>
    %6 = arith.mulf %4, %5 : vector<8x128xf32>
    %7 = math.roundeven %6 : vector<8x128xf32>
    %cst = arith.constant -1.280000e+02 : f32
    %cst_4 = arith.constant 1.270000e+02 : f32
    %8 = vector.broadcast %cst : f32 to vector<8x128xf32>
    %9 = arith.maximumf %8, %7 : vector<8x128xf32>
    %10 = vector.broadcast %cst_4 : f32 to vector<8x128xf32>
    %11 = arith.minimumf %10, %9 : vector<8x128xf32>
    %12 = arith.truncf %11 : vector<8x128xf32> to vector<8x128xbf16>
    %c0_5 = arith.constant 0 : index
    %c0_6 = arith.constant 0 : index
    %13 = vector.load %arg8[%c0_5, %c0_6] : memref<8x128xf32, #tpu.memory_space<vmem>>, vector<8x128xf32>
    %c0_7 = arith.constant 0 : index
    %c0_8 = arith.constant 0 : index
    %14 = vector.load %arg4[%c0_7, %c0_8] : memref<128x128xbf16, #tpu.memory_space<vmem>>, vector<128x128xbf16>
    %cst_9 = arith.constant dense<0.000000e+00> : vector<8x128xf32>
    %15 = tpu.matmul %12, %14, %cst_9 {dimension_numbers = #tpu.dot_dimension_numbers<[1], [0], [0], [1], [0, 0, 1, 1], [], []>} : vector<8x128xbf16>, vector<128x128xbf16>, vector<8x128xf32> -> vector<8x128xf32>
    %16 = arith.addf %13, %15 : vector<8x128xf32>
    %c0_10 = arith.constant 0 : index
    %c0_11 = arith.constant 0 : index
    %17 = vector.load %arg8[%c0_10, %c0_11] : memref<8x128xf32, #tpu.memory_space<vmem>>, vector<8x128xf32>
    tpu.vector_store %arg8[%c0_10, %c0_11], %16 {strides = array<i32>} : memref<8x128xf32, #tpu.memory_space<vmem>>, vector<8x128xf32>,
    %c0_i32_12 = arith.constant 0 : i32
    %18 = arith.cmpi eq, %arg2, %c0_i32_12 : i32
    %19 = arith.extui %18 : i1 to i32
    %c0_i32_13 = arith.constant 0 : i32
    %20 = arith.cmpi ne, %19, %c0_i32_13 : i32
    scf.if %20 {
      %c0_14 = arith.constant 0 : index
      %c0_15 = arith.constant 0 : index
      %21 = vector.load %arg8[%c0_14, %c0_15] : memref<8x128xf32, #tpu.memory_space<vmem>>, vector<8x128xf32>
      %c0_16 = arith.constant 0 : index
      %c0_17 = arith.constant 0 : index
      %22 = vector.load %arg5[%c0_16, %c0_17] : memref<1x128xf32, #tpu.memory_space<vmem>>, vector<1x128xf32>
      %23 = vector.broadcast %22 : vector<1x128xf32> to vector<8x128xf32>
      %24 = arith.addf %21, %23 : vector<8x128xf32>
      %cst_18 = arith.constant -2.14748365E+9 : f32
      %cst_19 = arith.constant 2.14748365E+9 : f32
      %25 = vector.broadcast %cst_18 : f32 to vector<8x128xf32>
      %26 = arith.maximumf %25, %24 : vector<8x128xf32>
      %27 = vector.broadcast %cst_19 : f32 to vector<8x128xf32>
      %28 = arith.minimumf %27, %26 : vector<8x128xf32>
      %c0_20 = arith.constant 0 : index
      %c0_21 = arith.constant 0 : index
      %29 = vector.load %arg7[%c0_20, %c0_21] : memref<8x128xf32, #tpu.memory_space<vmem>>, vector<8x128xf32>
      tpu.vector_store %arg7[%c0_20, %c0_21], %28 {strides = array<i32>} : memref<8x128xf32, #tpu.memory_space<vmem>>, vector<8x128xf32>,
    } else {
    }
    return
  }
  func.func @transform_0(%arg0: i32, %arg1: i32, %arg2: i32) -> (i32, i32) {
    %c0_i32 = arith.constant 0 : i32
    return %arg0, %arg2 : i32, i32
  }
  func.func @transform_1(%arg0: i32, %arg1: i32, %arg2: i32) -> (i32, i32) {
    %c0_i32 = arith.constant 0 : i32
    return %arg2, %arg1 : i32, i32
  }
  func.func @transform_2(%arg0: i32, %arg1: i32, %arg2: i32) -> (i32, i32) {
    %c0_i32 = arith.constant 0 : i32
    %c0_i32_0 = arith.constant 0 : i32
    return %c0_i32, %arg1 : i32, i32
  }
  func.func @transform_3(%arg0: i32, %arg1: i32, %arg2: i32) -> (i32, i32) {
    %c0_i32 = arith.constant 0 : i32
    %c0_i32_0 = arith.constant 0 : i32
    %c0_i32_1 = arith.constant 0 : i32
    return %c0_i32, %c0_i32_0 : i32, i32
  }
  func.func @transform_4(%arg0: i32, %arg1: i32, %arg2: i32) -> (i32, i32) {
    %c0_i32 = arith.constant 0 : i32
    return %arg0, %arg1 : i32, i32
  }
}

</mosaic_0001>

<llo_original>
// kernel: tpu_custom_call.1
$region0: #{tpu_custom_call.1}
  #allocation0 [shape = 'u32[]', space=smem, size = 0x4, offset = 0x4, fixed_abs, tag = 'smem constant byte address 0x4 - core index']
  #allocation1 [shape = 'u32[72,128]{1,0:T(1,128)}', space=vmem, size = 0x9000, scoped, tag = 'internal scratch']
  #allocation2 [shape = 'f32[8,128]{1,0:T(8,128)}', space=vmem, size = 0x1000, scoped, tag = 'scratch operand']
  #allocation3 [shape = 'f32[1,1]{1,0:T(1,128)S(6)}', space=smem, size = 0x200, scoped, tag = 'scoped memory for tpu_custom_call.1']
  %s0 = inlined_call_operand.hbm [shape: f32[8,128], index: 0, kind: input, shape index: {}]
  %s1 = inlined_call_operand.hbm [shape: bf16[128,128], index: 1, kind: input, shape index: {}]
  %s2 = inlined_call_operand.vmem [shape: f32[1,128], index: 2, kind: input, shape index: {}]
  %s3 = inlined_call_operand.<no memory space> [shape: f32[1,1], index: 3, kind: input, shape index: {}]
  %s4 = inlined_call_operand.hbm [shape: f32[8,128], index: 4, kind: output, shape index: {}]
  %s5 = sld [smem:[#allocation0]]
  $region42: #{tpu_custom_call.1} parent=0
    _
  %s7 = ssub.s32 1, %s5
  %s8 = scalar_select 0, %s7, %s5
  %9 = sst [smem:[#allocation3]] %s3
  $region1: #{tpu_custom_call.1} parent=0
    #allocation4 [shape = 'u8[4096]{0}', space=vmem, size = 0x1000, scoped, tag = 'input window, operand 0, single buffered']
    #allocation5 [shape = 's32[1]{0}', space=sflag, size = 0x4, scoped, tag = 'scoped memory for tpu_custom_call.1']
    #allocation6 [shape = 's32[1]{0}', space=sflag, size = 0x4, scoped, tag = 'scoped memory for tpu_custom_call.1']
    #allocation7 [shape = 'u8[32768]{0}', space=vmem, size = 0x8000, scoped, tag = 'input window, operand 1, single buffered']
    #allocation8 [shape = 's32[1]{0}', space=sflag, size = 0x4, scoped, tag = 'scoped memory for tpu_custom_call.1']
    #allocation9 [shape = 'u8[4096]{0}', space=vmem, size = 0x1000, scoped, tag = 'output window, operand 0, single buffered']
    %10 = vsyncpa [#allocation5], 0
    %11 = vsyncpa [#allocation8], 0
    %12 = vsyncpa [#allocation6], 0
    // Predicated region
    $region2: #{tpu_custom_call.1} parent=1 // pred_check
      _
    $region3: #{tpu_custom_call.1} parent=1 // pred_check_branch
      %14 = sbr.rel (0) target = $region5
    $region4: #{tpu_custom_call.1} parent=1 // pred_region
      %16 = vsyncadd [#allocation5], 0
      %s18 = sshll.u32 %s0, 4
      %s19 = int_to_ptr.hbm [resolvable:$true] %s18
      %s20 = sshll.u32 [#allocation4], 4
      %s21 = int_to_ptr.vmem [resolvable:$true] %s20
      %23 = dma.hbm_to_vmem [thread:$0]  %s19, 128, %s21, [#allocation5]
    $region5: #{tpu_custom_call.1} parent=1 // pred_fallthru
      _
    // Predicated region
    $region6: #{tpu_custom_call.1} parent=1 // pred_check
      _
    $region7: #{tpu_custom_call.1} parent=1 // pred_check_branch
      %25 = sbr.rel (0) target = $region9
    $region8: #{tpu_custom_call.1} parent=1 // pred_region
      %27 = vsyncadd [#allocation8], 0
      %s28 = sshll.u32 %s1, 4
      %s29 = int_to_ptr.hbm [resolvable:$true] %s28
      %s30 = sshll.u32 [#allocation7], 4
      %s31 = int_to_ptr.vmem [resolvable:$true] %s30
      %36 = dma.hbm_to_vmem [thread:$0]  %s29, 1024, %s31, [#allocation8], 64, 64, 4
    $region9: #{tpu_custom_call.1} parent=1 // pred_fallthru
      _
    // Predicated region
    $region10: #{tpu_custom_call.1} parent=1 // pred_check
      _
    $region11: #{tpu_custom_call.1} parent=1 // pred_check_branch
      %38 = sbr.rel (0) target = $region13
    $region12: #{tpu_custom_call.1} parent=1 // pred_region
      _
    $region13: #{tpu_custom_call.1} parent=1 // pred_fallthru
      _
    // Predicated region
    $region14: #{tpu_custom_call.1} parent=1 // pred_check
      _
    $region15: #{tpu_custom_call.1} parent=1 // pred_check_branch
      %40 = sbr.rel (0) target = $region17
    $region16: #{tpu_custom_call.1} parent=1 // pred_region
      _
    $region17: #{tpu_custom_call.1} parent=1 // pred_fallthru
      _
    // Predicated region
    $region18: #{tpu_custom_call.1} parent=1 // pred_check
      _
    $region19: #{tpu_custom_call.1} parent=1 // pred_check_branch
      %42 = sbr.rel (0) target = $region21
    $region20: #{tpu_custom_call.1} parent=1 // pred_region
      %44 = dma.done [#allocation5], 128
    $region21: #{tpu_custom_call.1} parent=1 // pred_fallthru
      _
    // Predicated region
    $region22: #{tpu_custom_call.1} parent=1 // pred_check
      _
    $region23: #{tpu_custom_call.1} parent=1 // pred_check_branch
      %46 = sbr.rel (0) target = $region25
    $region24: #{tpu_custom_call.1} parent=1 // pred_region
      %48 = dma.done [#allocation8], 1024
    $region25: #{tpu_custom_call.1} parent=1 // pred_fallthru
      _
    %p49 = scmp.eq.s32.totalorder 0, 0
    // Predicated region
    $region26: #{tpu_custom_call.1} parent=1 // pred_check
      %p50 = pneg %p49
    $region27: #{tpu_custom_call.1} parent=1 // pred_check_branch
      %52 = sbr.rel (%p50) target = $region29
    $region28: #{tpu_custom_call.1} parent=1 // pred_region
      %53 = vst [vmem:[#allocation2] sm:$0xff] 0.0
    $region29: #{tpu_custom_call.1} parent=1 // pred_fallthru
      _
    %s54 = sld [smem:[#allocation3]]
    %v55 = vld [vmem:[#allocation4] sm:$0xff]
    %v56 = vstv %s54
    %v57 = vmul.f32 %v55, %v56
    %v58 = vround.ne.pseudo %v57
    %v59 = vmax.f32 %v58, -128.0
    %v60 = vmin.f32 %v59, 127.0
    %v61 = vpack.c.bf16 %v60, %v60
    %v62 = vld [vmem:[#allocation2] sm:$0xff]
    %v63 = vld [vmem:[#allocation7] sm:$0xf]
    %v64 = vld [vmem:[#allocation7 + $0x4] sm:$0xf]
    %v65 = vld [vmem:[#allocation7 + $0x8] sm:$0xf]
    %v66 = vld [vmem:[#allocation7 + $0xc] sm:$0xf]
    %v67 = vld [vmem:[#allocation7 + $0x10] sm:$0xf]
    %v68 = vld [vmem:[#allocation7 + $0x14] sm:$0xf]
    %v69 = vld [vmem:[#allocation7 + $0x18] sm:$0xf]
    %v70 = vld [vmem:[#allocation7 + $0x1c] sm:$0xf]
    %v71 = vld [vmem:[#allocation7 + $0x20] sm:$0xf]
    %v72 = vld [vmem:[#allocation7 + $0x24] sm:$0xf]
    %v73 = vld [vmem:[#allocation7 + $0x28] sm:$0xf]
    %v74 = vld [vmem:[#allocation7 + $0x2c] sm:$0xf]
    %v75 = vld [vmem:[#allocation7 + $0x30] sm:$0xf]
    %v76 = vld [vmem:[#allocation7 + $0x34] sm:$0xf]
    %v77 = vld [vmem:[#allocation7 + $0x38] sm:$0xf]
    %v78 = vld [vmem:[#allocation7 + $0x3c] sm:$0xf]
    %v95 = vunpack.c.l.b16 %v63
    %v96 = vunpack.c.l.b16 %v64
    %v97 = vunpack.c.l.b16 %v65
    %v98 = vunpack.c.l.b16 %v66
    %v99 = vunpack.c.l.b16 %v67
    %v100 = vunpack.c.l.b16 %v68
    %v101 = vunpack.c.l.b16 %v69
    %v102 = vunpack.c.l.b16 %v70
    %v103 = vunpack.c.l.b16 %v71
    %v104 = vunpack.c.l.b16 %v72
    %v105 = vunpack.c.l.b16 %v73
    %v106 = vunpack.c.l.b16 %v74
    %v107 = vunpack.c.l.b16 %v75
    %v108 = vunpack.c.l.b16 %v76
    %v109 = vunpack.c.l.b16 %v77
    %v110 = vunpack.c.l.b16 %v78
    %v111 = vpack.c.b16 %v96, %v95
    %v112 = vpack.c.b16 %v98, %v97
    %v113 = vpack.c.b16 %v100, %v99
    %v114 = vpack.c.b16 %v102, %v101
    %v115 = vpack.c.b16 %v104, %v103
    %v116 = vpack.c.b16 %v106, %v105
    %v117 = vpack.c.b16 %v108, %v107
    %v118 = vpack.c.b16 %v110, %v109
    %127 = vmatpush.bf16.msra.mxu0 %v118
    %128 = vmatpush.bf16.msra.mxu0 %v117
    %129 = vmatpush.bf16.msra.mxu0 %v116
    %130 = vmatpush.bf16.msra.mxu0 %v115
    %131 = vmatpush.bf16.msra.mxu0 %v114
    %132 = vmatpush.bf16.msra.mxu0 %v113
    %133 = vmatpush.bf16.msra.mxu0 %v112
    %134 = vmatpush.bf16.msra.mxu0 %v111
    %135 = vmatmul.bf16.gmra.mxu0 %v61
    %v136 = vpop.f32.mrf.mxu0
    %v137 = vadd.f32 0.0, %v136
    %v138 = vpop.f32.mrf.mxu0
    %139 = vdwg.mxu0
    %v140 = vadd.f32 %v62, %v137
    %141 = vst [vmem:[#allocation2] sm:$0xff] %v140
    // Predicated region
    $region30: #{tpu_custom_call.1} parent=1 // pred_check
      %p142 = pneg %p49
    $region31: #{tpu_custom_call.1} parent=1 // pred_check_branch
      %144 = sbr.rel (%p142) target = $region33
    $region32: #{tpu_custom_call.1} parent=1 // pred_region
      %v145 = vld [vmem:[#allocation2] sm:$0xff]
      %v146 = vld [vmem:[%s2] sm:$0x1]
      %v148 = vperm.slane %v146, 0
      %v150 = vadd.f32 %v145, %v148
      %v151 = vmax.f32 %v150, -2.1474836e+09
      %v152 = vmin.f32 %v151, 2.1474836e+09
      %153 = vst [vmem:[#allocation9] sm:$0xff] %v152
    $region33: #{tpu_custom_call.1} parent=1 // pred_fallthru
      _
    // Predicated region
    $region34: #{tpu_custom_call.1} parent=1 // pred_check
      _
    $region35: #{tpu_custom_call.1} parent=1 // pred_check_branch
      %155 = sbr.rel (0) target = $region37
    $region36: #{tpu_custom_call.1} parent=1 // pred_region
      %157 = vsyncadd [#allocation6], 0
      %s159 = sshll.u32 [#allocation9], 4
      %s160 = int_to_ptr.vmem [resolvable:$true] %s159
      %s161 = sshll.u32 %s4, 4
      %s162 = int_to_ptr.hbm [resolvable:$true] %s161
      %164 = dma.vmem_to_hbm [thread:$0]  %s160, 128, %s162, [#allocation6]
    $region37: #{tpu_custom_call.1} parent=1 // pred_fallthru
      _
    // Predicated region
    $region38: #{tpu_custom_call.1} parent=1 // pred_check
      _
    $region39: #{tpu_custom_call.1} parent=1 // pred_check_branch
      %166 = sbr.rel (0) target = $region41
    $region40: #{tpu_custom_call.1} parent=1 // pred_region
      %168 = dma.done [#allocation6], 128
    $region41: #{tpu_custom_call.1} parent=1 // pred_fallthru
      _
    %169 = vsyncpa [#allocation5], 1
    %170 = vsyncpa [#allocation8], 1
    %171 = vsyncpa [#allocation6], 1

</llo_original>
